<compile_context>
chip_gen: v7x
topology: tpu7x:2x2x1
jax: 0.10.0
libtpu: 0.0.40
codegen_flags: <defaults>
</compile_context>

<pallas_src>
from functools import partial

import jax
import jax.numpy as jnp
from jax.experimental import pallas as pl
from jax.experimental.pallas import tpu as pltpu


# --------------------------------------------------------------------------- #
# Kernel
# --------------------------------------------------------------------------- #
def _integrator_kernel(params_ref, state_ref, new_state_ref):
    # params_ref: SMEM f32[7] = [dw, dx, dy, dz, vx, vy, vz]
    #   dq = to_versor(orientation_input / 10), v = translation_input / 10
    # state_ref / new_state_ref: VMEM f32[7, TILE_ROWS, 128]
    #   slabs 0..2 = position (x, y, z), slabs 3..6 = orientation (w, x, y, z).
    #   Each slab is a full (TILE_ROWS, 128) block -> dense 8-sublane vregs.
    dw = params_ref[0]
    dx = params_ref[1]
    dy = params_ref[2]
    dz = params_ref[3]
    vx = params_ref[4]
    vy = params_ref[5]
    vz = params_ref[6]

    qw = state_ref[3]
    qx = state_ref[4]
    qy = state_ref[5]
    qz = state_ref[6]

    # ---- position update: rotate constant v by each quaternion, add position.
    #   v' = v + 2 * u x (u x v + w v),  u = (qx, qy, qz)
    tx = qy * vz - qz * vy + qw * vx
    ty = qz * vx - qx * vz + qw * vy
    tz = qx * vy - qy * vx + qw * vz
    new_state_ref[0] = state_ref[0] + vx + 2.0 * (qy * tz - qz * ty)
    new_state_ref[1] = state_ref[1] + vy + 2.0 * (qz * tx - qx * tz)
    new_state_ref[2] = state_ref[2] + vz + 2.0 * (qx * ty - qy * tx)

    # ---- orientation update: Hamilton product orientation (x) dq, then normalize.
    nw = qw * dw - qx * dx - qy * dy - qz * dz
    nx = qw * dx + qx * dw + qy * dz - qz * dy
    ny = qw * dy - qx * dz + qy * dw + qz * dx
    nz = qw * dz + qx * dy - qy * dx + qz * dw
    # F.normalize(p=2, dim=-1, eps=0): plain divide by the norm.
    inv_norm = jax.lax.rsqrt(nw * nw + nx * nx + ny * ny + nz * nz)
    new_state_ref[3] = nw * inv_norm
    new_state_ref[4] = nx * inv_norm
    new_state_ref[5] = ny * inv_norm
    new_state_ref[6] = nz * inv_norm


# --------------------------------------------------------------------------- #
# Layout helpers (fused component-major state)
# --------------------------------------------------------------------------- #
def _ceil_to(x, m):
    return -(-x // m) * m


def _plan_tiles(n, target_rows=512):
    """Choose (rows_pad, tile_rows) for N bodies stored as (7, rows, 128) slabs.

    rows / tile_rows are multiples of 8 (sublane tile).  ~512 rows (~64K lanes)
    per grid step is ~7 MiB of double-buffered in+out VMEM, inside v5e's 16 MiB
    default scoped-VMEM limit while saturating HBM on v6e/v7x.  The grid is kept
    at >= 2 steps when there is enough work so the 'parallel' axis can shard
    across both TensorCores on v7x.
    """
    rows = _ceil_to(max(1, -(-n // 128)), 8)
    nsteps = max(1, -(-rows // target_rows))
    if rows >= 16:
        nsteps = max(nsteps, 2)
    tile_rows = _ceil_to(-(-rows // nsteps), 8)
    rows_pad = tile_rows * nsteps
    return rows_pad, tile_rows


def pack_state(position, orientation, rows_pad):
    """(N,3) positions + (N,4) quaternions (w,x,y,z) -> fused (7, rows_pad, 128).

    One-time layout conversion; simulation loops should keep the fused layout
    persistent across steps instead of repacking every call.
    """
    pos = jnp.asarray(position, jnp.float32)
    ori = jnp.asarray(orientation, jnp.float32)
    n = pos.shape[0]
    n_pad = rows_pad * 128
    comp = jnp.concatenate([pos, ori], axis=1)                      # (N, 7)
    # Pad with identity state (pos = 0, quat = (1,0,0,0)) so padded lanes stay finite.
    ident = jnp.array([0.0, 0.0, 0.0, 1.0, 0.0, 0.0, 0.0], jnp.float32)
    pad = jnp.broadcast_to(ident, (n_pad - n, 7))
    comp = jnp.concatenate([comp, pad], axis=0)                     # (n_pad, 7)
    return comp.T.reshape(7, rows_pad, 128)


def unpack_state(state, n):
    """Fused (7, rows, 128) state -> (orientation (N,4), position (N,3))."""
    comp = state.reshape(7, -1)[:, :n].T                            # (N, 7)
    return comp[:, 3:7], comp[:, 0:3]


# --------------------------------------------------------------------------- #
# Step (functional equivalent of ConfigurationIntegrator.forward)
# --------------------------------------------------------------------------- #
@partial(jax.jit, static_argnames=("tile_rows",))
def configuration_integrator_step(state, orientation_input, translation_input, *,
                                  tile_rows):
    """One integrator step on fused component-major state (7, rows_pad, 128)."""
    c, rows_pad, lanes = state.shape
    if c != 7 or lanes != 128:
        raise ValueError(f"state must be (7, rows, 128), got {state.shape}")
    if tile_rows % 8 != 0 or rows_pad % tile_rows != 0:
        raise ValueError(f"tile_rows={tile_rows} must be a multiple of 8 dividing "
                         f"rows_pad={rows_pad}")
    state = jnp.asarray(state, jnp.float32)

    # ---- hoisted scalar math (once per call, not per grid step / per lane) ----
    v = jnp.asarray(translation_input, jnp.float32) / 10.0          # (3,)
    r = jnp.asarray(orientation_input, jnp.float32) / 10.0          # (3,)
    theta2 = jnp.sum(r * r)
    theta = jnp.sqrt(theta2)
    half = 0.5 * theta
    small = theta < 1e-8
    safe_theta = jnp.where(small, 1.0, theta)
    s_over = jnp.where(small, 0.5 - theta2 / 48.0, jnp.sin(half) / safe_theta)
    dq = jnp.concatenate([jnp.cos(half)[None], r * s_over])         # (4,) unit versor
    params = jnp.concatenate([dq, v])                               # (7,) -> SMEM

    grid = (rows_pad // tile_rows,)
    grid_spec = pltpu.PrefetchScalarGridSpec(
        num_scalar_prefetch=1,
        grid=grid,
        in_specs=[pl.BlockSpec((7, tile_rows, 128), lambda i, p_ref: (0, i, 0))],
        out_specs=pl.BlockSpec((7, tile_rows, 128), lambda i, p_ref: (0, i, 0)),
    )
    return pl.pallas_call(
        _integrator_kernel,
        out_shape=jax.ShapeDtypeStruct((7, rows_pad, 128), jnp.float32),
        grid_spec=grid_spec,
        # State is semantically updated in place across simulation steps; alias the
        # fused state input to the output (operand 0 is the scalar-prefetch array).
        input_output_aliases={1: 0},
        compiler_params=pltpu.CompilerParams(
            dimension_semantics=("parallel",)),
    )(params, state)


def configuration_integrator_step_rowmajor(position, orientation,
                                           orientation_input, translation_input,
                                           target_rows=512):
    """PyTorch-layout convenience wrapper: (N,3)/(N,4) in -> ((N,4), (N,3)) out.

    Pays a full pack/unpack layout conversion per call; simulation loops should
    keep the fused (7, rows, 128) state and call configuration_integrator_step.
    """
    n = position.shape[0]
    rows_pad, tile_rows = _plan_tiles(n, target_rows)
    state = pack_state(position, orientation, rows_pad)
    new_state = configuration_integrator_step(
        state, orientation_input, translation_input, tile_rows=tile_rows)
    return unpack_state(new_state, n)


# ---------------- pure-JAX reference (row-major, for validation) ---------------- #
def _reference(position, orientation, orientation_input, translation_input):
    q = orientation                                                  # (N, 4)
    w = q[:, 0]
    v = jnp.broadcast_to(translation_input / 10.0, position.shape)   # (N, 3)
    u = q[:, 1:4]
    t = jnp.cross(u, v) + w[:, None] * v
    new_pos = v + 2.0 * jnp.cross(u, t) + position

    r = orientation_input / 10.0
    theta = jnp.linalg.norm(r)
    s_over = jnp.where(theta < 1e-8, 0.5 - theta * theta / 48.0,
                       jnp.sin(theta / 2.0) / jnp.where(theta < 1e-8, 1.0, theta))
    dq = jnp.concatenate([jnp.cos(theta / 2.0)[None], r * s_over])   # (4,)
    dw, dx, dy, dz = dq
    qw, qx, qy, qz = q[:, 0], q[:, 1], q[:, 2], q[:, 3]
    nw = qw * dw - qx * dx - qy * dy - qz * dz
    nx = qw * dx + qx * dw + qy * dz - qz * dy
    ny = qw * dy - qx * dz + qy * dw + qz * dx
    nz = qw * dz + qx * dy - qy * dx + qz * dw
    nq = jnp.stack([nw, nx, ny, nz], axis=-1)
    new_ori = nq / jnp.linalg.norm(nq, axis=-1, keepdims=True)
    return new_ori, new_pos


if __name__ == "__main__":
    key = jax.random.PRNGKey(0)
    k1, k2, k3, k4 = jax.random.split(key, 4)

    orientation_input = jax.random.normal(k3, (3,), jnp.float32)
    translation_input = jax.random.normal(k4, (3,), jnp.float32)

    # ---- Case 1: small, non-128-aligned N (exercises padding; single grid step)
    N = 300
    position = jax.random.normal(k1, (N, 3), jnp.float32)
    q_raw = jax.random.normal(k2, (N, 4), jnp.float32)
    orientation = q_raw / jnp.linalg.norm(q_raw, axis=-1, keepdims=True)

    rows_pad, tile_rows = _plan_tiles(N)
    state = pack_state(position, orientation, rows_pad)             # (7, 8, 128)
    new_state = configuration_integrator_step(
        state, orientation_input, translation_input, tile_rows=tile_rows)
    jax.block_until_ready(new_state)
    new_ori, new_pos = unpack_state(new_state, N)

    ref_ori, ref_pos = _reference(position, orientation,
                                  orientation_input, translation_input)
    assert new_ori.shape == (N, 4) and new_pos.shape == (N, 3)
    assert jnp.allclose(new_ori, ref_ori, atol=2e-4, rtol=2e-4)
    assert jnp.allclose(new_pos, ref_pos, atol=2e-4, rtol=2e-4)

    # ---- Case 2: larger N -> multi-step pipelined grid (>= 2 steps for v7x)
    N2 = 2112
    position2 = jax.random.normal(k1, (N2, 3), jnp.float32)
    q_raw2 = jax.random.normal(k2, (N2, 4), jnp.float32)
    orientation2 = q_raw2 / jnp.linalg.norm(q_raw2, axis=-1, keepdims=True)

    new_ori2, new_pos2 = configuration_integrator_step_rowmajor(
        position2, orientation2, orientation_input, translation_input)
    jax.block_until_ready((new_ori2, new_pos2))
    ref_ori2, ref_pos2 = _reference(position2, orientation2,
                                    orientation_input, translation_input)
    assert jnp.allclose(new_ori2, ref_ori2, atol=2e-4, rtol=2e-4)
    assert jnp.allclose(new_pos2, ref_pos2, atol=2e-4, rtol=2e-4)

    print("KERNEL_OK")
</pallas_src>

<mosaic_0001>
module attributes {stable_mosaic.version = 11 : i64} {
  func.func @_integrator_kernel(%arg0: i32, %arg1: memref<7xf32, #tpu.memory_space<smem>>, %arg2: memref<7x8x128xf32, #tpu.memory_space<vmem>>, %arg3: memref<7x8x128xf32, #tpu.memory_space<vmem>>) attributes {dimension_semantics = [#tpu.dimension_semantics<parallel>], iteration_bounds = array<i64: 1>, scalar_prefetch = 1 : i64, scratch_operands = 0 : i64, tpu.core_type = #tpu.core_type<tc>, window_params = [{transform_indices = @transform_0, window_bounds = array<i64: 7, 8, 128>}, {transform_indices = @transform_1, window_bounds = array<i64: 7, 8, 128>}]} {
    %c0 = arith.constant 0 : index
    %0 = memref.load %arg1[%c0] : memref<7xf32, #tpu.memory_space<smem>>
    %c1 = arith.constant 1 : index
    %1 = memref.load %arg1[%c1] : memref<7xf32, #tpu.memory_space<smem>>
    %c2 = arith.constant 2 : index
    %2 = memref.load %arg1[%c2] : memref<7xf32, #tpu.memory_space<smem>>
    %c3 = arith.constant 3 : index
    %3 = memref.load %arg1[%c3] : memref<7xf32, #tpu.memory_space<smem>>
    %c4 = arith.constant 4 : index
    %4 = memref.load %arg1[%c4] : memref<7xf32, #tpu.memory_space<smem>>
    %c5 = arith.constant 5 : index
    %5 = memref.load %arg1[%c5] : memref<7xf32, #tpu.memory_space<smem>>
    %c6 = arith.constant 6 : index
    %6 = memref.load %arg1[%c6] : memref<7xf32, #tpu.memory_space<smem>>
    %c3_0 = arith.constant 3 : index
    %c0_1 = arith.constant 0 : index
    %c0_2 = arith.constant 0 : index
    %7 = vector.load %arg2[%c3_0, %c0_1, %c0_2] : memref<7x8x128xf32, #tpu.memory_space<vmem>>, vector<1x8x128xf32>
    %8 = vector.shape_cast %7 : vector<1x8x128xf32> to vector<8x128xf32>
    %c4_3 = arith.constant 4 : index
    %c0_4 = arith.constant 0 : index
    %c0_5 = arith.constant 0 : index
    %9 = vector.load %arg2[%c4_3, %c0_4, %c0_5] : memref<7x8x128xf32, #tpu.memory_space<vmem>>, vector<1x8x128xf32>
    %10 = vector.shape_cast %9 : vector<1x8x128xf32> to vector<8x128xf32>
    %c5_6 = arith.constant 5 : index
    %c0_7 = arith.constant 0 : index
    %c0_8 = arith.constant 0 : index
    %11 = vector.load %arg2[%c5_6, %c0_7, %c0_8] : memref<7x8x128xf32, #tpu.memory_space<vmem>>, vector<1x8x128xf32>
    %12 = vector.shape_cast %11 : vector<1x8x128xf32> to vector<8x128xf32>
    %c6_9 = arith.constant 6 : index
    %c0_10 = arith.constant 0 : index
    %c0_11 = arith.constant 0 : index
    %13 = vector.load %arg2[%c6_9, %c0_10, %c0_11] : memref<7x8x128xf32, #tpu.memory_space<vmem>>, vector<1x8x128xf32>
    %14 = vector.shape_cast %13 : vector<1x8x128xf32> to vector<8x128xf32>
    %15 = vector.broadcast %6 : f32 to vector<8x128xf32>
    %16 = arith.mulf %12, %15 : vector<8x128xf32>
    %17 = vector.broadcast %5 : f32 to vector<8x128xf32>
    %18 = arith.mulf %14, %17 : vector<8x128xf32>
    %19 = arith.subf %16, %18 : vector<8x128xf32>
    %20 = vector.broadcast %4 : f32 to vector<8x128xf32>
    %21 = arith.mulf %8, %20 : vector<8x128xf32>
    %22 = arith.addf %19, %21 : vector<8x128xf32>
    %23 = vector.broadcast %4 : f32 to vector<8x128xf32>
    %24 = arith.mulf %14, %23 : vector<8x128xf32>
    %25 = vector.broadcast %6 : f32 to vector<8x128xf32>
    %26 = arith.mulf %10, %25 : vector<8x128xf32>
    %27 = arith.subf %24, %26 : vector<8x128xf32>
    %28 = vector.broadcast %5 : f32 to vector<8x128xf32>
    %29 = arith.mulf %8, %28 : vector<8x128xf32>
    %30 = arith.addf %27, %29 : vector<8x128xf32>
    %31 = vector.broadcast %5 : f32 to vector<8x128xf32>
    %32 = arith.mulf %10, %31 : vector<8x128xf32>
    %33 = vector.broadcast %4 : f32 to vector<8x128xf32>
    %34 = arith.mulf %12, %33 : vector<8x128xf32>
    %35 = arith.subf %32, %34 : vector<8x128xf32>
    %36 = vector.broadcast %6 : f32 to vector<8x128xf32>
    %37 = arith.mulf %8, %36 : vector<8x128xf32>
    %38 = arith.addf %35, %37 : vector<8x128xf32>
    %c0_12 = arith.constant 0 : index
    %c0_13 = arith.constant 0 : index
    %c0_14 = arith.constant 0 : index
    %39 = vector.load %arg2[%c0_12, %c0_13, %c0_14] : memref<7x8x128xf32, #tpu.memory_space<vmem>>, vector<1x8x128xf32>
    %40 = vector.shape_cast %39 : vector<1x8x128xf32> to vector<8x128xf32>
    %41 = vector.broadcast %4 : f32 to vector<8x128xf32>
    %42 = arith.addf %40, %41 : vector<8x128xf32>
    %43 = arith.mulf %12, %38 : vector<8x128xf32>
    %44 = arith.mulf %14, %30 : vector<8x128xf32>
    %45 = arith.subf %43, %44 : vector<8x128xf32>
    %cst = arith.constant 2.000000e+00 : f32
    %46 = vector.broadcast %cst : f32 to vector<8x128xf32>
    %47 = arith.mulf %46, %45 : vector<8x128xf32>
    %48 = arith.addf %42, %47 : vector<8x128xf32>
    %c0_15 = arith.constant 0 : index
    %c0_16 = arith.constant 0 : index
    %c0_17 = arith.constant 0 : index
    %49 = vector.load %arg3[%c0_15, %c0_16, %c0_17] : memref<7x8x128xf32, #tpu.memory_space<vmem>>, vector<1x8x128xf32>
    %50 = vector.shape_cast %49 : vector<1x8x128xf32> to vector<8x128xf32>
    %51 = vector.shape_cast %48 : vector<8x128xf32> to vector<1x8x128xf32>
    tpu.vector_store %arg3[%c0_15, %c0_16, %c0_17], %51 {strides = array<i32>} : memref<7x8x128xf32, #tpu.memory_space<vmem>>, vector<1x8x128xf32>,
    %c1_18 = arith.constant 1 : index
    %c0_19 = arith.constant 0 : index
    %c0_20 = arith.constant 0 : index
    %52 = vector.load %arg2[%c1_18, %c0_19, %c0_20] : memref<7x8x128xf32, #tpu.memory_space<vmem>>, vector<1x8x128xf32>
    %53 = vector.shape_cast %52 : vector<1x8x128xf32> to vector<8x128xf32>
    %54 = vector.broadcast %5 : f32 to vector<8x128xf32>
    %55 = arith.addf %53, %54 : vector<8x128xf32>
    %56 = arith.mulf %14, %22 : vector<8x128xf32>
    %57 = arith.mulf %10, %38 : vector<8x128xf32>
    %58 = arith.subf %56, %57 : vector<8x128xf32>
    %cst_21 = arith.constant 2.000000e+00 : f32
    %59 = vector.broadcast %cst_21 : f32 to vector<8x128xf32>
    %60 = arith.mulf %59, %58 : vector<8x128xf32>
    %61 = arith.addf %55, %60 : vector<8x128xf32>
    %c1_22 = arith.constant 1 : index
    %c0_23 = arith.constant 0 : index
    %c0_24 = arith.constant 0 : index
    %62 = vector.load %arg3[%c1_22, %c0_23, %c0_24] : memref<7x8x128xf32, #tpu.memory_space<vmem>>, vector<1x8x128xf32>
    %63 = vector.shape_cast %62 : vector<1x8x128xf32> to vector<8x128xf32>
    %64 = vector.shape_cast %61 : vector<8x128xf32> to vector<1x8x128xf32>
    tpu.vector_store %arg3[%c1_22, %c0_23, %c0_24], %64 {strides = array<i32>} : memref<7x8x128xf32, #tpu.memory_space<vmem>>, vector<1x8x128xf32>,
    %c2_25 = arith.constant 2 : index
    %c0_26 = arith.constant 0 : index
    %c0_27 = arith.constant 0 : index
    %65 = vector.load %arg2[%c2_25, %c0_26, %c0_27] : memref<7x8x128xf32, #tpu.memory_space<vmem>>, vector<1x8x128xf32>
    %66 = vector.shape_cast %65 : vector<1x8x128xf32> to vector<8x128xf32>
    %67 = vector.broadcast %6 : f32 to vector<8x128xf32>
    %68 = arith.addf %66, %67 : vector<8x128xf32>
    %69 = arith.mulf %10, %30 : vector<8x128xf32>
    %70 = arith.mulf %12, %22 : vector<8x128xf32>
    %71 = arith.subf %69, %70 : vector<8x128xf32>
    %cst_28 = arith.constant 2.000000e+00 : f32
    %72 = vector.broadcast %cst_28 : f32 to vector<8x128xf32>
    %73 = arith.mulf %72, %71 : vector<8x128xf32>
    %74 = arith.addf %68, %73 : vector<8x128xf32>
    %c2_29 = arith.constant 2 : index
    %c0_30 = arith.constant 0 : index
    %c0_31 = arith.constant 0 : index
    %75 = vector.load %arg3[%c2_29, %c0_30, %c0_31] : memref<7x8x128xf32, #tpu.memory_space<vmem>>, vector<1x8x128xf32>
    %76 = vector.shape_cast %75 : vector<1x8x128xf32> to vector<8x128xf32>
    %77 = vector.shape_cast %74 : vector<8x128xf32> to vector<1x8x128xf32>
    tpu.vector_store %arg3[%c2_29, %c0_30, %c0_31], %77 {strides = array<i32>} : memref<7x8x128xf32, #tpu.memory_space<vmem>>, vector<1x8x128xf32>,
    %78 = vector.broadcast %0 : f32 to vector<8x128xf32>
    %79 = arith.mulf %8, %78 : vector<8x128xf32>
    %80 = vector.broadcast %1 : f32 to vector<8x128xf32>
    %81 = arith.mulf %10, %80 : vector<8x128xf32>
    %82 = arith.subf %79, %81 : vector<8x128xf32>
    %83 = vector.broadcast %2 : f32 to vector<8x128xf32>
    %84 = arith.mulf %12, %83 : vector<8x128xf32>
    %85 = arith.subf %82, %84 : vector<8x128xf32>
    %86 = vector.broadcast %3 : f32 to vector<8x128xf32>
    %87 = arith.mulf %14, %86 : vector<8x128xf32>
    %88 = arith.subf %85, %87 : vector<8x128xf32>
    %89 = vector.broadcast %1 : f32 to vector<8x128xf32>
    %90 = arith.mulf %8, %89 : vector<8x128xf32>
    %91 = vector.broadcast %0 : f32 to vector<8x128xf32>
    %92 = arith.mulf %10, %91 : vector<8x128xf32>
    %93 = arith.addf %90, %92 : vector<8x128xf32>
    %94 = vector.broadcast %3 : f32 to vector<8x128xf32>
    %95 = arith.mulf %12, %94 : vector<8x128xf32>
    %96 = arith.addf %93, %95 : vector<8x128xf32>
    %97 = vector.broadcast %2 : f32 to vector<8x128xf32>
    %98 = arith.mulf %14, %97 : vector<8x128xf32>
    %99 = arith.subf %96, %98 : vector<8x128xf32>
    %100 = vector.broadcast %2 : f32 to vector<8x128xf32>
    %101 = arith.mulf %8, %100 : vector<8x128xf32>
    %102 = vector.broadcast %3 : f32 to vector<8x128xf32>
    %103 = arith.mulf %10, %102 : vector<8x128xf32>
    %104 = arith.subf %101, %103 : vector<8x128xf32>
    %105 = vector.broadcast %0 : f32 to vector<8x128xf32>
    %106 = arith.mulf %12, %105 : vector<8x128xf32>
    %107 = arith.addf %104, %106 : vector<8x128xf32>
    %108 = vector.broadcast %1 : f32 to vector<8x128xf32>
    %109 = arith.mulf %14, %108 : vector<8x128xf32>
    %110 = arith.addf %107, %109 : vector<8x128xf32>
    %111 = vector.broadcast %3 : f32 to vector<8x128xf32>
    %112 = arith.mulf %8, %111 : vector<8x128xf32>
    %113 = vector.broadcast %2 : f32 to vector<8x128xf32>
    %114 = arith.mulf %10, %113 : vector<8x128xf32>
    %115 = arith.addf %112, %114 : vector<8x128xf32>
    %116 = vector.broadcast %1 : f32 to vector<8x128xf32>
    %117 = arith.mulf %12, %116 : vector<8x128xf32>
    %118 = arith.subf %115, %117 : vector<8x128xf32>
    %119 = vector.broadcast %0 : f32 to vector<8x128xf32>
    %120 = arith.mulf %14, %119 : vector<8x128xf32>
    %121 = arith.addf %118, %120 : vector<8x128xf32>
    %122 = arith.mulf %88, %88 : vector<8x128xf32>
    %123 = arith.mulf %99, %99 : vector<8x128xf32>
    %124 = arith.addf %122, %123 : vector<8x128xf32>
    %125 = arith.mulf %110, %110 : vector<8x128xf32>
    %126 = arith.addf %124, %125 : vector<8x128xf32>
    %127 = arith.mulf %121, %121 : vector<8x128xf32>
    %128 = arith.addf %126, %127 : vector<8x128xf32>
    %129 = math.rsqrt %128 : vector<8x128xf32>
    %130 = arith.mulf %88, %129 : vector<8x128xf32>
    %c3_32 = arith.constant 3 : index
    %c0_33 = arith.constant 0 : index
    %c0_34 = arith.constant 0 : index
    %131 = vector.load %arg3[%c3_32, %c0_33, %c0_34] : memref<7x8x128xf32, #tpu.memory_space<vmem>>, vector<1x8x128xf32>
    %132 = vector.shape_cast %131 : vector<1x8x128xf32> to vector<8x128xf32>
    %133 = vector.shape_cast %130 : vector<8x128xf32> to vector<1x8x128xf32>
    tpu.vector_store %arg3[%c3_32, %c0_33, %c0_34], %133 {strides = array<i32>} : memref<7x8x128xf32, #tpu.memory_space<vmem>>, vector<1x8x128xf32>,
    %134 = arith.mulf %99, %129 : vector<8x128xf32>
    %c4_35 = arith.constant 4 : index
    %c0_36 = arith.constant 0 : index
    %c0_37 = arith.constant 0 : index
    %135 = vector.load %arg3[%c4_35, %c0_36, %c0_37] : memref<7x8x128xf32, #tpu.memory_space<vmem>>, vector<1x8x128xf32>
    %136 = vector.shape_cast %135 : vector<1x8x128xf32> to vector<8x128xf32>
    %137 = vector.shape_cast %134 : vector<8x128xf32> to vector<1x8x128xf32>
    tpu.vector_store %arg3[%c4_35, %c0_36, %c0_37], %137 {strides = array<i32>} : memref<7x8x128xf32, #tpu.memory_space<vmem>>, vector<1x8x128xf32>,
    %138 = arith.mulf %110, %129 : vector<8x128xf32>
    %c5_38 = arith.constant 5 : index
    %c0_39 = arith.constant 0 : index
    %c0_40 = arith.constant 0 : index
    %139 = vector.load %arg3[%c5_38, %c0_39, %c0_40] : memref<7x8x128xf32, #tpu.memory_space<vmem>>, vector<1x8x128xf32>
    %140 = vector.shape_cast %139 : vector<1x8x128xf32> to vector<8x128xf32>
    %141 = vector.shape_cast %138 : vector<8x128xf32> to vector<1x8x128xf32>
    tpu.vector_store %arg3[%c5_38, %c0_39, %c0_40], %141 {strides = array<i32>} : memref<7x8x128xf32, #tpu.memory_space<vmem>>, vector<1x8x128xf32>,
    %142 = arith.mulf %121, %129 : vector<8x128xf32>
    %c6_41 = arith.constant 6 : index
    %c0_42 = arith.constant 0 : index
    %c0_43 = arith.constant 0 : index
    %143 = vector.load %arg3[%c6_41, %c0_42, %c0_43] : memref<7x8x128xf32, #tpu.memory_space<vmem>>, vector<1x8x128xf32>
    %144 = vector.shape_cast %143 : vector<1x8x128xf32> to vector<8x128xf32>
    %145 = vector.shape_cast %142 : vector<8x128xf32> to vector<1x8x128xf32>
    tpu.vector_store %arg3[%c6_41, %c0_42, %c0_43], %145 {strides = array<i32>} : memref<7x8x128xf32, #tpu.memory_space<vmem>>, vector<1x8x128xf32>,
    return
  }
  func.func @transform_0(%arg0: i32, %arg1: memref<7xf32, #tpu.memory_space<smem>>) -> (i32, i32, i32) {
    %c0_i32 = arith.constant 0 : i32
    %c0_i32_0 = arith.constant 0 : i32
    %c0_i32_1 = arith.constant 0 : i32
    return %c0_i32, %arg0, %c0_i32_0 : i32, i32, i32
  }
  func.func @transform_1(%arg0: i32, %arg1: memref<7xf32, #tpu.memory_space<smem>>) -> (i32, i32, i32) {
    %c0_i32 = arith.constant 0 : i32
    %c0_i32_0 = arith.constant 0 : i32
    %c0_i32_1 = arith.constant 0 : i32
    return %c0_i32, %arg0, %c0_i32_0 : i32, i32, i32
  }
}

</mosaic_0001>

<llo_original>
// kernel: configuration_integrator_step.1
$region0: #{configuration_integrator_step.1}
  #allocation0 [shape = 'u32[]', space=smem, size = 0x4, offset = 0x4, fixed_abs, tag = 'smem constant byte address 0x4 - core index']
  #allocation1 [shape = 'u32[144,128]{1,0:T(1,128)}', space=vmem, size = 0x12000, scoped, tag = 'internal scratch']
  #allocation2 [shape = 's32[1]{0}', space=sflag, size = 0x4, scoped, tag = 'scoped memory for configuration_integrator_step.1']
  #allocation3 [shape = 'u8[512]{0}', space=smem, size = 0x200, scoped, tag = 'prefetched SMEM operand 0']
  %s0 = inlined_call_operand.vmem [shape: f32[7], index: 0, kind: input, shape index: {}]
  %s1 = inlined_call_operand.hbm [shape: f32[7,8,128], index: 1, kind: input, shape index: {}, may-alias: {1,2}]
  %s2 = inlined_call_operand.hbm [shape: f32[7,8,128], index: 2, kind: output, shape index: {}, may-alias: {1,2}]
  %s3 = sld [smem:[#allocation0]]
  $region18: #{configuration_integrator_step.1} parent=0
    _
  %s5 = ssub.s32 1, %s3
  %s6 = scalar_select 0, %s5, %s3
  %s7 = sshll.u32 %s0, 4
  %s8 = int_to_ptr.vmem [resolvable:$true] %s7
  %10 = dma.vmem_to_smem %s8, 16, [#allocation3], [#allocation2]
  %11 = dma.done [#allocation2], 16
  %12 = sfence
  $region1: #{configuration_integrator_step.1} parent=0
    #allocation4 [shape = 'u8[28672]{0}', space=vmem, size = 0x7000, scoped, tag = 'input window, operand 1, single buffered']
    #allocation5 [shape = 's32[1]{0}', space=sflag, size = 0x4, scoped, tag = 'scoped memory for configuration_integrator_step.1']
    #allocation6 [shape = 's32[1]{0}', space=sflag, size = 0x4, scoped, tag = 'scoped memory for configuration_integrator_step.1']
    #allocation7 [shape = 'u8[28672]{0}', space=vmem, size = 0x7000, scoped, tag = 'output window, operand 0, single buffered']
    %13 = vsyncpa [#allocation5], 0
    %14 = vsyncpa [#allocation6], 0
    // Predicated region
    $region2: #{configuration_integrator_step.1} parent=1 // pred_check
      _
    $region3: #{configuration_integrator_step.1} parent=1 // pred_check_branch
      %16 = sbr.rel (0) target = $region5
    $region4: #{configuration_integrator_step.1} parent=1 // pred_region
      %s18 = ssub.s32 896, 896
      %19 = vsyncadd [#allocation5], %s18
      %s20 = sshll.u32 [#allocation4], 4
      %s21 = int_to_ptr.vmem [resolvable:$true] %s20
      %26 = dma.hbm_to_vmem [thread:$0]  %s1, 896, %s21, [#allocation5], 128, 128, 8
    $region5: #{configuration_integrator_step.1} parent=1 // pred_fallthru
      _
    // Predicated region
    $region6: #{configuration_integrator_step.1} parent=1 // pred_check
      _
    $region7: #{configuration_integrator_step.1} parent=1 // pred_check_branch
      %28 = sbr.rel (0) target = $region9
    $region8: #{configuration_integrator_step.1} parent=1 // pred_region
      %29 = dma.done [#allocation5], 896
    $region9: #{configuration_integrator_step.1} parent=1 // pred_fallthru
      _
    %s30 = sld [smem:[#allocation3]]
    %s31 = sld [smem:[#allocation3 + $0x1]]
    %s32 = sld [smem:[#allocation3 + $0x2]]
    %s33 = sld [smem:[#allocation3 + $0x3]]
    %s34 = sld [smem:[#allocation3 + $0x4]]
    %s35 = sld [smem:[#allocation3 + $0x5]]
    %s36 = sld [smem:[#allocation3 + $0x6]]
    %s37 = scalar_lea.vmem [#allocation4], 24
    %v38 = vld [vmem:[%s37] sm:$0xff]
    %s39 = scalar_lea.vmem [#allocation4], 32
    %v40 = vld [vmem:[%s39] sm:$0xff]
    %s41 = scalar_lea.vmem [#allocation4], 40
    %v42 = vld [vmem:[%s41] sm:$0xff]
    %s43 = scalar_lea.vmem [#allocation4], 48
    %v44 = vld [vmem:[%s43] sm:$0xff]
    %v45 = vstv %s36
    %v46 = vmul.f32 %v42, %v45
    %v47 = vstv %s35
    %v48 = vmul.f32 %v44, %v47
    %v49 = vsub.f32 %v46, %v48
    %v50 = vstv %s34
    %v51 = vmul.f32 %v38, %v50
    %v52 = vadd.f32 %v49, %v51
    %v53 = vmul.f32 %v44, %v50
    %v54 = vmul.f32 %v40, %v45
    %v55 = vsub.f32 %v53, %v54
    %v56 = vmul.f32 %v38, %v47
    %v57 = vadd.f32 %v55, %v56
    %v58 = vmul.f32 %v40, %v47
    %v59 = vmul.f32 %v42, %v50
    %v60 = vsub.f32 %v58, %v59
    %v61 = vmul.f32 %v38, %v45
    %v62 = vadd.f32 %v60, %v61
    %v63 = vld [vmem:[#allocation4] sm:$0xff]
    %v64 = vadd.f32 %v63, %v50
    %v65 = vmul.f32 %v42, %v62
    %v66 = vmul.f32 %v44, %v57
    %v67 = vsub.f32 %v65, %v66
    %v68 = vmul.f32 %v67, 2.0
    %v69 = vadd.f32 %v64, %v68
    %70 = vst [vmem:[#allocation7] sm:$0xff] %v69
    %s71 = scalar_lea.vmem [#allocation4], 8
    %v72 = vld [vmem:[%s71] sm:$0xff]
    %v73 = vadd.f32 %v72, %v47
    %v74 = vmul.f32 %v44, %v52
    %v75 = vmul.f32 %v40, %v62
    %v76 = vsub.f32 %v74, %v75
    %v77 = vmul.f32 %v76, 2.0
    %v78 = vadd.f32 %v73, %v77
    %s79 = scalar_lea.vmem [#allocation7], 8
    %80 = vst [vmem:[%s79] sm:$0xff] %v78
    %s81 = scalar_lea.vmem [#allocation4], 16
    %v82 = vld [vmem:[%s81] sm:$0xff]
    %v83 = vadd.f32 %v82, %v45
    %v84 = vmul.f32 %v40, %v57
    %v85 = vmul.f32 %v42, %v52
    %v86 = vsub.f32 %v84, %v85
    %v87 = vmul.f32 %v86, 2.0
    %v88 = vadd.f32 %v83, %v87
    %s89 = scalar_lea.vmem [#allocation7], 16
    %90 = vst [vmem:[%s89] sm:$0xff] %v88
    %v91 = vstv %s30
    %v92 = vmul.f32 %v38, %v91
    %v93 = vstv %s31
    %v94 = vmul.f32 %v40, %v93
    %v95 = vsub.f32 %v92, %v94
    %v96 = vstv %s32
    %v97 = vmul.f32 %v42, %v96
    %v98 = vsub.f32 %v95, %v97
    %v99 = vstv %s33
    %v100 = vmul.f32 %v44, %v99
    %v101 = vsub.f32 %v98, %v100
    %v102 = vmul.f32 %v38, %v93
    %v103 = vmul.f32 %v40, %v91
    %v104 = vadd.f32 %v102, %v103
    %v105 = vmul.f32 %v42, %v99
    %v106 = vadd.f32 %v104, %v105
    %v107 = vmul.f32 %v44, %v96
    %v108 = vsub.f32 %v106, %v107
    %v109 = vmul.f32 %v38, %v96
    %v110 = vmul.f32 %v40, %v99
    %v111 = vsub.f32 %v109, %v110
    %v112 = vmul.f32 %v42, %v91
    %v113 = vadd.f32 %v111, %v112
    %v114 = vmul.f32 %v44, %v93
    %v115 = vadd.f32 %v113, %v114
    %v116 = vmul.f32 %v38, %v99
    %v117 = vmul.f32 %v40, %v96
    %v118 = vadd.f32 %v116, %v117
    %v119 = vmul.f32 %v42, %v93
    %v120 = vsub.f32 %v118, %v119
    %v121 = vmul.f32 %v44, %v91
    %v122 = vadd.f32 %v120, %v121
    %v123 = vmul.f32 %v101, %v101
    %v124 = vmul.f32 %v108, %v108
    %v125 = vadd.f32 %v123, %v124
    %v126 = vmul.f32 %v115, %v115
    %v127 = vadd.f32 %v125, %v126
    %v128 = vmul.f32 %v122, %v122
    %v129 = vadd.f32 %v127, %v128
    %v130 = vrsqrt.pop %v129
    %v131 = vmul.f32 %v101, %v130
    %s132 = scalar_lea.vmem [#allocation7], 24
    %133 = vst [vmem:[%s132] sm:$0xff] %v131
    %v134 = vmul.f32 %v108, %v130
    %s135 = scalar_lea.vmem [#allocation7], 32
    %136 = vst [vmem:[%s135] sm:$0xff] %v134
    %v137 = vmul.f32 %v115, %v130
    %s138 = scalar_lea.vmem [#allocation7], 40
    %139 = vst [vmem:[%s138] sm:$0xff] %v137
    %v140 = vmul.f32 %v122, %v130
    %s141 = scalar_lea.vmem [#allocation7], 48
    %142 = vst [vmem:[%s141] sm:$0xff] %v140
    // Predicated region
    $region10: #{configuration_integrator_step.1} parent=1 // pred_check
      _
    $region11: #{configuration_integrator_step.1} parent=1 // pred_check_branch
      %144 = sbr.rel (0) target = $region13
    $region12: #{configuration_integrator_step.1} parent=1 // pred_region
      %s146 = ssub.s32 896, 896
      %147 = vsyncadd [#allocation6], %s146
      %s148 = sshll.u32 [#allocation7], 4
      %s149 = int_to_ptr.vmem [resolvable:$true] %s148
      %154 = dma.vmem_to_hbm [thread:$0]  %s149, 896, %s2, [#allocation6], 128, 128, 8
    $region13: #{configuration_integrator_step.1} parent=1 // pred_fallthru
      _
    // Predicated region
    $region14: #{configuration_integrator_step.1} parent=1 // pred_check
      _
    $region15: #{configuration_integrator_step.1} parent=1 // pred_check_branch
      %156 = sbr.rel (0) target = $region17
    $region16: #{configuration_integrator_step.1} parent=1 // pred_region
      %157 = dma.done [#allocation6], 896
    $region17: #{configuration_integrator_step.1} parent=1 // pred_fallthru
      _
    %158 = vsyncpa [#allocation5], 1
    %159 = vsyncpa [#allocation6], 1

</llo_original>
